<compile_context>
chip_gen: v5e
topology: v5e:2x2
jax: 0.10.0
libtpu: 0.0.40
codegen_flags: <defaults>
</compile_context>

<pallas_src>
import functools

import jax
import jax.numpy as jnp
from jax.experimental import pallas as pl
from jax.experimental.pallas import tpu as pltpu


def attn_decoder_kernel(x_ref, hx_ref, cx_ref, w_ref, b_ref, wcls_ref, bcls_ref,
                        logits_ref, hxo_ref, cxo_ref, lse_ref,
                        feat_sc, m_sc, l_sc, *, hidden_size, num_layers):
    H = hidden_size
    j = pl.program_id(0)

    # ---- first vocab tile: run the stacked LSTM cells + (degenerate) attention once ----
    @pl.when(j == 0)
    def _():
        inp = x_ref[...]                                       # (B, H)
        h_parts, c_parts = [], []
        for l in range(num_layers):                            # static unroll over layers
            h = hx_ref[:, l * H:(l + 1) * H]                   # (B, H)
            c = cx_ref[:, l * H:(l + 1) * H]
            z = jnp.concatenate([inp, h], axis=-1)             # (B, 2H): one fused matmul
            gates = jnp.dot(z, w_ref[l], preferred_element_type=jnp.float32) + b_ref[l]
            sig = jax.nn.sigmoid(gates)                        # full-width (B, 4H)
            tnh = jnp.tanh(gates)                              # full-width (B, 4H)
            i_g = sig[:, 0 * H:1 * H]
            f_g = sig[:, 1 * H:2 * H]
            g_g = tnh[:, 2 * H:3 * H]
            o_g = sig[:, 3 * H:4 * H]
            c_new = f_g * c + i_g * g_g
            h_new = o_g * jnp.tanh(c_new)
            h_parts.append(h_new)
            c_parts.append(c_new)
            inp = h_new
        # lane-dense packed state: a single (B, L*H) = (8,128) slab each (unmasked stores)
        hxo_ref[...] = jnp.concatenate(h_parts, axis=-1)
        cxo_ref[...] = jnp.concatenate(c_parts, axis=-1)

        out = inp                                              # decoder output == hx[L-1]
        # Reference attention: bmm(softmax(src_output @ out^T), out).sum(1)
        #   = (sum_s softmax(.)[s]) * out = out   (softmax weights sum to 1),
        # i.e. a numerical no-op, so src_output never needs to enter the kernel.
        # TODO(synk): if real attention over encoder outputs is intended it must instead be
        #             attn = einsum('bs,bsh->bh', softmax(scores), src_output).
        attn = out
        feat_sc[...] = jnp.concatenate([attn, out], axis=-1)   # (B, 2H) classifier input
        m_sc[...] = jnp.full(m_sc.shape, -jnp.inf, jnp.float32)
        l_sc[...] = jnp.zeros(l_sc.shape, jnp.float32)

    # ---- every vocab tile: fused classifier matmul + online max / log-sum-exp ----
    feat = feat_sc[...]
    logits = (jnp.dot(feat.astype(wcls_ref.dtype), wcls_ref[...],
                      preferred_element_type=jnp.float32)
              + bcls_ref[...])                                 # (B, TV) f32
    logits_ref[...] = logits                                   # lane-dense 128-wide store

    m_prev = m_sc[...]
    m_new = jnp.maximum(m_prev, jnp.max(logits, axis=-1, keepdims=True))
    l_sc[...] = (l_sc[...] * jnp.exp(m_prev - m_new)
                 + jnp.sum(jnp.exp(logits - m_new), axis=-1, keepdims=True))
    m_sc[...] = m_new

    @pl.when(j == pl.num_programs(0) - 1)
    def _():
        lse_ref[...] = m_sc[...] + jnp.log(l_sc[...])


def pack_state(s):
    """(L, B, H) -> (B, L*H): layers packed along lanes (lane-dense state)."""
    L, B, H = s.shape
    return jnp.transpose(s, (1, 0, 2)).reshape(B, L * H)


def unpack_state(s, num_layers, hidden_size):
    """(B, L*H) -> (L, B, H)."""
    B = s.shape[0]
    return jnp.transpose(s.reshape(B, num_layers, hidden_size), (1, 0, 2))


def prepare_params(params):
    """One-time (per session, NOT per decode step) weight fusion / transposition."""
    L, fourH, H = params["w_ih"].shape
    w_lstm = jnp.concatenate([jnp.transpose(params["w_ih"], (0, 2, 1)),
                              jnp.transpose(params["w_hh"], (0, 2, 1))], axis=1)   # (L, 2H, 4H)
    b_lstm = (params["b_ih"] + params["b_hh"]).reshape(L, 1, fourH)
    return {
        "embedding": params["embedding"],
        "w_lstm": w_lstm,
        "b_lstm": b_lstm,
        # Classifier weight is the dominant HBM stream at real vocab sizes -> bf16.
        # LSTM weights stay f32: at H=32 the recurrent-state check is tighter than bf16 noise.
        "w_cls_t": params["w_cls"].T.astype(jnp.bfloat16),     # (2H, V)
        "b_cls": params["b_cls"].reshape(1, -1),               # (1, V)
    }


def attn_decoder_forward(x_ids, state, src_output, cur_i, prep, *, hidden_size, num_layers,
                         v_tile=128):
    """One decode step. `state` is the lane-packed (hx, cx), each (B, L*H)."""
    del cur_i         # unused by the PyTorch forward as well
    del src_output    # attention over src_output is a numerical no-op (see kernel comment)
    # TODO(synk): for a full decode loop, add a 'step' grid axis (constant weight index maps)
    #             so LSTM/classifier weights stay resident in VMEM across tokens.

    hx_p, cx_p = state
    B = hx_p.shape[0]
    L, H = num_layers, hidden_size
    V = prep["w_cls_t"].shape[1]
    TV = min(v_tile, V)
    assert V % TV == 0, "demo assumes vocab size is a multiple of the 128-lane tile"
    n_v = V // TV

    emb = prep["embedding"][x_ids.reshape(-1)]                 # (B, H) gather stays in JAX glue

    logits, hx_out, cx_out, lse = pl.pallas_call(
        functools.partial(attn_decoder_kernel, hidden_size=H, num_layers=L),
        out_shape=(jax.ShapeDtypeStruct((B, V), jnp.float32),
                   jax.ShapeDtypeStruct((B, L * H), jnp.float32),
                   jax.ShapeDtypeStruct((B, L * H), jnp.float32),
                   jax.ShapeDtypeStruct((B, 1), jnp.float32)),
        grid=(n_v,),
        in_specs=[
            pl.BlockSpec((B, H), lambda j: (0, 0)),                  # embedded token
            pl.BlockSpec((B, L * H), lambda j: (0, 0)),              # hx packed
            pl.BlockSpec((B, L * H), lambda j: (0, 0)),              # cx packed
            pl.BlockSpec((L, 2 * H, 4 * H), lambda j: (0, 0, 0)),    # fused LSTM weights
            pl.BlockSpec((L, 1, 4 * H), lambda j: (0, 0, 0)),        # fused LSTM biases
            pl.BlockSpec((2 * H, TV), lambda j: (0, j)),             # streamed W_cls tile (bf16)
            pl.BlockSpec((1, TV), lambda j: (0, j)),                 # streamed b_cls tile
        ],
        out_specs=(
            pl.BlockSpec((B, TV), lambda j: (0, j)),                 # logits (128-lane tiles)
            pl.BlockSpec((B, L * H), lambda j: (0, 0)),              # hx_out packed
            pl.BlockSpec((B, L * H), lambda j: (0, 0)),              # cx_out packed
            pl.BlockSpec((B, 1), lambda j: (0, 0)),                  # log-sum-exp
        ),
        scratch_shapes=[
            pltpu.VMEM((B, 2 * H), jnp.float32),                     # classifier feature vec
            pltpu.VMEM((B, 1), jnp.float32),                         # running max
            pltpu.VMEM((B, 1), jnp.float32),                         # running sum-exp
        ],
        input_output_aliases={1: 1, 2: 2},                           # hx/cx updated in place
        # The vocab axis carries the online-lse accumulator, hence "arbitrary" (a reduction).
        # To shard it across v7x's two TensorCores, emit per-tile (m, l) partials instead and
        # combine them in the wrapper.
        compiler_params=pltpu.CompilerParams(dimension_semantics=("arbitrary",)),
    )(emb, hx_p, cx_p, prep["w_lstm"], prep["b_lstm"], prep["w_cls_t"], prep["b_cls"])

    # Finish the log-softmax: vocab-tiled output blocks cannot be revisited once the global
    # lse is known, so the (cheap, mem-bound) subtraction happens in the wrapper.
    logp = logits - lse
    # TODO(synk): the torch code cats a 3-D and a 4-D tensor (cat(attention, output.unsqueeze(1)));
    #             we implement the evident intent: a (B, 1, V) log-prob feature vector.
    return logp.reshape(B, 1, V), (hx_out, cx_out)


def init_params(key, vocab_size, hidden_size, num_layers=4):
    H = hidden_size
    k = 1.0 / jnp.sqrt(jnp.float32(H))
    ks = jax.random.split(key, 7)
    return {
        "embedding": jax.random.normal(ks[0], (vocab_size, H), jnp.float32),
        "w_ih": jax.random.uniform(ks[1], (num_layers, 4 * H, H), jnp.float32, -k, k),
        "w_hh": jax.random.uniform(ks[2], (num_layers, 4 * H, H), jnp.float32, -k, k),
        "b_ih": jax.random.uniform(ks[3], (num_layers, 4 * H), jnp.float32, -k, k),
        "b_hh": jax.random.uniform(ks[4], (num_layers, 4 * H), jnp.float32, -k, k),
        "w_cls": jax.random.uniform(ks[5], (vocab_size, 2 * H), jnp.float32, -k, k),
        "b_cls": jax.random.uniform(ks[6], (vocab_size,), jnp.float32, -k, k),
    }


def reference_forward(x_ids, state, src_output, params, hidden_size, num_layers):
    """Pure-JAX reference of the PyTorch forward (including the full attention math)."""
    H = hidden_size
    hx, cx = state
    inp = params["embedding"][x_ids.reshape(-1)]
    hs, cs = [], []
    for l in range(num_layers):
        gates = (inp @ params["w_ih"][l].T + params["b_ih"][l]
                 + hx[l] @ params["w_hh"][l].T + params["b_hh"][l])
        i_g = jax.nn.sigmoid(gates[:, :H])
        f_g = jax.nn.sigmoid(gates[:, H:2 * H])
        g_g = jnp.tanh(gates[:, 2 * H:3 * H])
        o_g = jax.nn.sigmoid(gates[:, 3 * H:])
        c = f_g * cx[l] + i_g * g_g
        h = o_g * jnp.tanh(c)
        hs.append(h)
        cs.append(c)
        inp = h
    out = inp
    scores = jnp.einsum("bsh,bh->bs", src_output, out)
    alpha = jax.nn.softmax(scores, axis=-1)
    attn = jnp.einsum("bs,bh->bh", alpha, out)              # == out up to rounding
    feat = jnp.concatenate([attn, out], axis=-1)
    logits = feat @ params["w_cls"].T + params["b_cls"]
    logp = jax.nn.log_softmax(logits, axis=-1)
    return logp, jnp.stack(hs), jnp.stack(cs)


if __name__ == "__main__":
    vocab_size, hidden_size, num_layers = 256, 32, 4      # V=256 exercises 2 vocab tiles
    B, S = 8, 8

    root = jax.random.PRNGKey(0)
    kp, kx, kh, kc, ks = jax.random.split(root, 5)
    params = init_params(kp, vocab_size, hidden_size, num_layers)
    prep = prepare_params(params)                          # hoisted: once per session

    x_ids = jax.random.randint(kx, (B, 1), 0, vocab_size, dtype=jnp.int32)
    hx0 = 0.1 * jax.random.normal(kh, (num_layers, B, hidden_size), jnp.float32)
    cx0 = 0.1 * jax.random.normal(kc, (num_layers, B, hidden_size), jnp.float32)
    src_output = jax.random.normal(ks, (B, S, hidden_size), jnp.float32)

    state = (pack_state(hx0), pack_state(cx0))
    feature_vector, (hx_p, cx_p) = attn_decoder_forward(
        x_ids, state, src_output, cur_i=0, prep=prep,
        hidden_size=hidden_size, num_layers=num_layers)
    jax.block_until_ready((feature_vector, hx_p, cx_p))

    # sanity check against pure-JAX reference
    ref_logp, ref_hx, ref_cx = reference_forward(
        x_ids, (hx0, cx0), src_output, params, hidden_size, num_layers)
    hx_new = unpack_state(hx_p, num_layers, hidden_size)
    cx_new = unpack_state(cx_p, num_layers, hidden_size)
    ok = (bool(jnp.allclose(feature_vector[:, 0, :], ref_logp, atol=2e-3, rtol=2e-3))
          and bool(jnp.allclose(hx_new, ref_hx, atol=2e-3, rtol=2e-3))
          and bool(jnp.allclose(cx_new, ref_cx, atol=2e-3, rtol=2e-3)))
    if not ok:
        raise AssertionError("Pallas kernel output does not match JAX reference")
    print("KERNEL_OK")
</pallas_src>

<mosaic_0001>
module attributes {stable_mosaic.version = 11 : i64} {
  func.func @attn_decoder_kernel(%arg0: i32, %arg1: memref<8x32xf32, #tpu.memory_space<vmem>>, %arg2: memref<8x128xf32, #tpu.memory_space<vmem>>, %arg3: memref<8x128xf32, #tpu.memory_space<vmem>>, %arg4: memref<4x64x128xf32, #tpu.memory_space<vmem>>, %arg5: memref<4x1x128xf32, #tpu.memory_space<vmem>>, %arg6: memref<64x128xbf16, #tpu.memory_space<vmem>>, %arg7: memref<1x128xf32, #tpu.memory_space<vmem>>, %arg8: memref<8x128xf32, #tpu.memory_space<vmem>>, %arg9: memref<8x128xf32, #tpu.memory_space<vmem>>, %arg10: memref<8x128xf32, #tpu.memory_space<vmem>>, %arg11: memref<8x1xf32, #tpu.memory_space<vmem>>, %arg12: memref<8x64xf32, #tpu.memory_space<vmem>>, %arg13: memref<8x1xf32, #tpu.memory_space<vmem>>, %arg14: memref<8x1xf32, #tpu.memory_space<vmem>>) attributes {dimension_semantics = [#tpu.dimension_semantics<arbitrary>], iteration_bounds = array<i64: 2>, scalar_prefetch = 0 : i64, scratch_operands = 3 : i64, tpu.core_type = #tpu.core_type<tc>, window_params = [{pipeline_mode = #tpu.pipeline_mode<synchronous>, transform_indices = @transform_0, window_bounds = array<i64: 8, 32>}, {pipeline_mode = #tpu.pipeline_mode<synchronous>, transform_indices = @transform_1, window_bounds = array<i64: 8, 128>}, {pipeline_mode = #tpu.pipeline_mode<synchronous>, transform_indices = @transform_2, window_bounds = array<i64: 8, 128>}, {pipeline_mode = #tpu.pipeline_mode<synchronous>, transform_indices = @transform_3, window_bounds = array<i64: 4, 64, 128>}, {pipeline_mode = #tpu.pipeline_mode<synchronous>, transform_indices = @transform_4, window_bounds = array<i64: 4, 1, 128>}, {transform_indices = @transform_5, window_bounds = array<i64: 64, 128>}, {transform_indices = @transform_6, window_bounds = array<i64: 1, 128>}, {transform_indices = @transform_7, window_bounds = array<i64: 8, 128>}, {pipeline_mode = #tpu.pipeline_mode<synchronous>, transform_indices = @transform_8, window_bounds = array<i64: 8, 128>}, {pipeline_mode = #tpu.pipeline_mode<synchronous>, transform_indices = @transform_9, window_bounds = array<i64: 8, 128>}, {pipeline_mode = #tpu.pipeline_mode<synchronous>, transform_indices = @transform_10, window_bounds = array<i64: 8, 1>}]} {
    %c0_i32 = arith.constant 0 : i32
    %0 = arith.cmpi eq, %arg0, %c0_i32 : i32
    %1 = arith.extui %0 : i1 to i32
    %c0_i32_0 = arith.constant 0 : i32
    %2 = arith.cmpi ne, %1, %c0_i32_0 : i32
    scf.if %2 {
      %c0_19 = arith.constant 0 : index
      %c0_20 = arith.constant 0 : index
      %30 = vector.load %arg1[%c0_19, %c0_20] : memref<8x32xf32, #tpu.memory_space<vmem>>, vector<8x32xf32>
      %c0_21 = arith.constant 0 : index
      %c0_22 = arith.constant 0 : index
      %31 = vector.load %arg2[%c0_21, %c0_22] : memref<8x128xf32, #tpu.memory_space<vmem>>, vector<8x32xf32>
      %c0_23 = arith.constant 0 : index
      %c0_24 = arith.constant 0 : index
      %32 = vector.load %arg3[%c0_23, %c0_24] : memref<8x128xf32, #tpu.memory_space<vmem>>, vector<8x32xf32>
      %33 = tpu.concatenate %30, %31 in 1 : vector<8x32xf32>, vector<8x32xf32> -> vector<8x64xf32>
      %c0_25 = arith.constant 0 : index
      %c0_26 = arith.constant 0 : index
      %c0_27 = arith.constant 0 : index
      %34 = vector.load %arg4[%c0_25, %c0_26, %c0_27] : memref<4x64x128xf32, #tpu.memory_space<vmem>>, vector<1x64x128xf32>
      %35 = vector.shape_cast %34 : vector<1x64x128xf32> to vector<64x128xf32>
      %cst_28 = arith.constant dense<0.000000e+00> : vector<8x128xf32>
      %36 = tpu.matmul %33, %35, %cst_28 {dimension_numbers = #tpu.dot_dimension_numbers<[1], [0], [0], [1], [0, 0, 1, 1], [], []>} : vector<8x64xf32>, vector<64x128xf32>, vector<8x128xf32> -> vector<8x128xf32>
      %c0_29 = arith.constant 0 : index
      %c0_30 = arith.constant 0 : index
      %c0_31 = arith.constant 0 : index
      %37 = vector.load %arg5[%c0_29, %c0_30, %c0_31] : memref<4x1x128xf32, #tpu.memory_space<vmem>>, vector<1x1x128xf32>
      %38 = vector.shape_cast %37 : vector<1x1x128xf32> to vector<1x128xf32>
      %39 = vector.broadcast %38 : vector<1x128xf32> to vector<8x128xf32>
      %40 = arith.addf %36, %39 : vector<8x128xf32>
      %41 = arith.negf %40 : vector<8x128xf32>
      %42 = math.exp %41 : vector<8x128xf32>
      %cst_32 = arith.constant 1.000000e+00 : f32
      %43 = vector.broadcast %cst_32 : f32 to vector<8x128xf32>
      %44 = arith.addf %43, %42 : vector<8x128xf32>
      %45 = arith.divf %43, %44 : vector<8x128xf32>
      %46 = math.tanh %40 : vector<8x128xf32>
      %47 = vector.extract_strided_slice %45 {offsets = [0, 0], sizes = [8, 32], strides = [1, 1]} : vector<8x128xf32> to vector<8x32xf32>
      %48 = vector.extract_strided_slice %45 {offsets = [0, 32], sizes = [8, 32], strides = [1, 1]} : vector<8x128xf32> to vector<8x32xf32>
      %49 = vector.extract_strided_slice %46 {offsets = [0, 64], sizes = [8, 32], strides = [1, 1]} : vector<8x128xf32> to vector<8x32xf32>
      %50 = vector.extract_strided_slice %45 {offsets = [0, 96], sizes = [8, 32], strides = [1, 1]} : vector<8x128xf32> to vector<8x32xf32>
      %51 = arith.mulf %48, %32 : vector<8x32xf32>
      %52 = arith.mulf %47, %49 : vector<8x32xf32>
      %53 = arith.addf %51, %52 : vector<8x32xf32>
      %54 = math.tanh %53 : vector<8x32xf32>
      %55 = arith.mulf %50, %54 : vector<8x32xf32>
      %c0_33 = arith.constant 0 : index
      %c32 = arith.constant 32 : index
      %56 = vector.load %arg2[%c0_33, %c32] : memref<8x128xf32, #tpu.memory_space<vmem>>, vector<8x32xf32>
      %c0_34 = arith.constant 0 : index
      %c32_35 = arith.constant 32 : index
      %57 = vector.load %arg3[%c0_34, %c32_35] : memref<8x128xf32, #tpu.memory_space<vmem>>, vector<8x32xf32>
      %58 = tpu.concatenate %55, %56 in 1 : vector<8x32xf32>, vector<8x32xf32> -> vector<8x64xf32>
      %c1 = arith.constant 1 : index
      %c0_36 = arith.constant 0 : index
      %c0_37 = arith.constant 0 : index
      %59 = vector.load %arg4[%c1, %c0_36, %c0_37] : memref<4x64x128xf32, #tpu.memory_space<vmem>>, vector<1x64x128xf32>
      %60 = vector.shape_cast %59 : vector<1x64x128xf32> to vector<64x128xf32>
      %cst_38 = arith.constant dense<0.000000e+00> : vector<8x128xf32>
      %61 = tpu.matmul %58, %60, %cst_38 {dimension_numbers = #tpu.dot_dimension_numbers<[1], [0], [0], [1], [0, 0, 1, 1], [], []>} : vector<8x64xf32>, vector<64x128xf32>, vector<8x128xf32> -> vector<8x128xf32>
      %c1_39 = arith.constant 1 : index
      %c0_40 = arith.constant 0 : index
      %c0_41 = arith.constant 0 : index
      %62 = vector.load %arg5[%c1_39, %c0_40, %c0_41] : memref<4x1x128xf32, #tpu.memory_space<vmem>>, vector<1x1x128xf32>
      %63 = vector.shape_cast %62 : vector<1x1x128xf32> to vector<1x128xf32>
      %64 = vector.broadcast %63 : vector<1x128xf32> to vector<8x128xf32>
      %65 = arith.addf %61, %64 : vector<8x128xf32>
      %66 = arith.negf %65 : vector<8x128xf32>
      %67 = math.exp %66 : vector<8x128xf32>
      %cst_42 = arith.constant 1.000000e+00 : f32
      %68 = vector.broadcast %cst_42 : f32 to vector<8x128xf32>
      %69 = arith.addf %68, %67 : vector<8x128xf32>
      %70 = arith.divf %68, %69 : vector<8x128xf32>
      %71 = math.tanh %65 : vector<8x128xf32>
      %72 = vector.extract_strided_slice %70 {offsets = [0, 0], sizes = [8, 32], strides = [1, 1]} : vector<8x128xf32> to vector<8x32xf32>
      %73 = vector.extract_strided_slice %70 {offsets = [0, 32], sizes = [8, 32], strides = [1, 1]} : vector<8x128xf32> to vector<8x32xf32>
      %74 = vector.extract_strided_slice %71 {offsets = [0, 64], sizes = [8, 32], strides = [1, 1]} : vector<8x128xf32> to vector<8x32xf32>
      %75 = vector.extract_strided_slice %70 {offsets = [0, 96], sizes = [8, 32], strides = [1, 1]} : vector<8x128xf32> to vector<8x32xf32>
      %76 = arith.mulf %73, %57 : vector<8x32xf32>
      %77 = arith.mulf %72, %74 : vector<8x32xf32>
      %78 = arith.addf %76, %77 : vector<8x32xf32>
      %79 = math.tanh %78 : vector<8x32xf32>
      %80 = arith.mulf %75, %79 : vector<8x32xf32>
      %c0_43 = arith.constant 0 : index
      %c64 = arith.constant 64 : index
      %81 = vector.load %arg2[%c0_43, %c64] : memref<8x128xf32, #tpu.memory_space<vmem>>, vector<8x32xf32>
      %c0_44 = arith.constant 0 : index
      %c64_45 = arith.constant 64 : index
      %82 = vector.load %arg3[%c0_44, %c64_45] : memref<8x128xf32, #tpu.memory_space<vmem>>, vector<8x32xf32>
      %83 = tpu.concatenate %80, %81 in 1 : vector<8x32xf32>, vector<8x32xf32> -> vector<8x64xf32>
      %c2 = arith.constant 2 : index
      %c0_46 = arith.constant 0 : index
      %c0_47 = arith.constant 0 : index
      %84 = vector.load %arg4[%c2, %c0_46, %c0_47] : memref<4x64x128xf32, #tpu.memory_space<vmem>>, vector<1x64x128xf32>
      %85 = vector.shape_cast %84 : vector<1x64x128xf32> to vector<64x128xf32>
      %cst_48 = arith.constant dense<0.000000e+00> : vector<8x128xf32>
      %86 = tpu.matmul %83, %85, %cst_48 {dimension_numbers = #tpu.dot_dimension_numbers<[1], [0], [0], [1], [0, 0, 1, 1], [], []>} : vector<8x64xf32>, vector<64x128xf32>, vector<8x128xf32> -> vector<8x128xf32>
      %c2_49 = arith.constant 2 : index
      %c0_50 = arith.constant 0 : index
      %c0_51 = arith.constant 0 : index
      %87 = vector.load %arg5[%c2_49, %c0_50, %c0_51] : memref<4x1x128xf32, #tpu.memory_space<vmem>>, vector<1x1x128xf32>
      %88 = vector.shape_cast %87 : vector<1x1x128xf32> to vector<1x128xf32>
      %89 = vector.broadcast %88 : vector<1x128xf32> to vector<8x128xf32>
      %90 = arith.addf %86, %89 : vector<8x128xf32>
      %91 = arith.negf %90 : vector<8x128xf32>
      %92 = math.exp %91 : vector<8x128xf32>
      %cst_52 = arith.constant 1.000000e+00 : f32
      %93 = vector.broadcast %cst_52 : f32 to vector<8x128xf32>
      %94 = arith.addf %93, %92 : vector<8x128xf32>
      %95 = arith.divf %93, %94 : vector<8x128xf32>
      %96 = math.tanh %90 : vector<8x128xf32>
      %97 = vector.extract_strided_slice %95 {offsets = [0, 0], sizes = [8, 32], strides = [1, 1]} : vector<8x128xf32> to vector<8x32xf32>
      %98 = vector.extract_strided_slice %95 {offsets = [0, 32], sizes = [8, 32], strides = [1, 1]} : vector<8x128xf32> to vector<8x32xf32>
      %99 = vector.extract_strided_slice %96 {offsets = [0, 64], sizes = [8, 32], strides = [1, 1]} : vector<8x128xf32> to vector<8x32xf32>
      %100 = vector.extract_strided_slice %95 {offsets = [0, 96], sizes = [8, 32], strides = [1, 1]} : vector<8x128xf32> to vector<8x32xf32>
      %101 = arith.mulf %98, %82 : vector<8x32xf32>
      %102 = arith.mulf %97, %99 : vector<8x32xf32>
      %103 = arith.addf %101, %102 : vector<8x32xf32>
      %104 = math.tanh %103 : vector<8x32xf32>
      %105 = arith.mulf %100, %104 : vector<8x32xf32>
      %c0_53 = arith.constant 0 : index
      %c96 = arith.constant 96 : index
      %106 = vector.load %arg2[%c0_53, %c96] : memref<8x128xf32, #tpu.memory_space<vmem>>, vector<8x32xf32>
      %c0_54 = arith.constant 0 : index
      %c96_55 = arith.constant 96 : index
      %107 = vector.load %arg3[%c0_54, %c96_55] : memref<8x128xf32, #tpu.memory_space<vmem>>, vector<8x32xf32>
      %108 = tpu.concatenate %105, %106 in 1 : vector<8x32xf32>, vector<8x32xf32> -> vector<8x64xf32>
      %c3 = arith.constant 3 : index
      %c0_56 = arith.constant 0 : index
      %c0_57 = arith.constant 0 : index
      %109 = vector.load %arg4[%c3, %c0_56, %c0_57] : memref<4x64x128xf32, #tpu.memory_space<vmem>>, vector<1x64x128xf32>
      %110 = vector.shape_cast %109 : vector<1x64x128xf32> to vector<64x128xf32>
      %cst_58 = arith.constant dense<0.000000e+00> : vector<8x128xf32>
      %111 = tpu.matmul %108, %110, %cst_58 {dimension_numbers = #tpu.dot_dimension_numbers<[1], [0], [0], [1], [0, 0, 1, 1], [], []>} : vector<8x64xf32>, vector<64x128xf32>, vector<8x128xf32> -> vector<8x128xf32>
      %c3_59 = arith.constant 3 : index
      %c0_60 = arith.constant 0 : index
      %c0_61 = arith.constant 0 : index
      %112 = vector.load %arg5[%c3_59, %c0_60, %c0_61] : memref<4x1x128xf32, #tpu.memory_space<vmem>>, vector<1x1x128xf32>
      %113 = vector.shape_cast %112 : vector<1x1x128xf32> to vector<1x128xf32>
      %114 = vector.broadcast %113 : vector<1x128xf32> to vector<8x128xf32>
      %115 = arith.addf %111, %114 : vector<8x128xf32>
      %116 = arith.negf %115 : vector<8x128xf32>
      %117 = math.exp %116 : vector<8x128xf32>
      %cst_62 = arith.constant 1.000000e+00 : f32
      %118 = vector.broadcast %cst_62 : f32 to vector<8x128xf32>
      %119 = arith.addf %118, %117 : vector<8x128xf32>
      %120 = arith.divf %118, %119 : vector<8x128xf32>
      %121 = math.tanh %115 : vector<8x128xf32>
      %122 = vector.extract_strided_slice %120 {offsets = [0, 0], sizes = [8, 32], strides = [1, 1]} : vector<8x128xf32> to vector<8x32xf32>
      %123 = vector.extract_strided_slice %120 {offsets = [0, 32], sizes = [8, 32], strides = [1, 1]} : vector<8x128xf32> to vector<8x32xf32>
      %124 = vector.extract_strided_slice %121 {offsets = [0, 64], sizes = [8, 32], strides = [1, 1]} : vector<8x128xf32> to vector<8x32xf32>
      %125 = vector.extract_strided_slice %120 {offsets = [0, 96], sizes = [8, 32], strides = [1, 1]} : vector<8x128xf32> to vector<8x32xf32>
      %126 = arith.mulf %123, %107 : vector<8x32xf32>
      %127 = arith.mulf %122, %124 : vector<8x32xf32>
      %128 = arith.addf %126, %127 : vector<8x32xf32>
      %129 = math.tanh %128 : vector<8x32xf32>
      %130 = arith.mulf %125, %129 : vector<8x32xf32>
      %131 = tpu.concatenate %55, %80, %105, %130 in 1 : vector<8x32xf32>, vector<8x32xf32>, vector<8x32xf32>, vector<8x32xf32> -> vector<8x128xf32>
      %c0_63 = arith.constant 0 : index
      %c0_64 = arith.constant 0 : index
      %132 = vector.load %arg9[%c0_63, %c0_64] : memref<8x128xf32, #tpu.memory_space<vmem>>, vector<8x128xf32>
      tpu.vector_store %arg9[%c0_63, %c0_64], %131 {strides = array<i32>} : memref<8x128xf32, #tpu.memory_space<vmem>>, vector<8x128xf32>,
      %133 = tpu.concatenate %53, %78, %103, %128 in 1 : vector<8x32xf32>, vector<8x32xf32>, vector<8x32xf32>, vector<8x32xf32> -> vector<8x128xf32>
      %c0_65 = arith.constant 0 : index
      %c0_66 = arith.constant 0 : index
      %134 = vector.load %arg10[%c0_65, %c0_66] : memref<8x128xf32, #tpu.memory_space<vmem>>, vector<8x128xf32>
      tpu.vector_store %arg10[%c0_65, %c0_66], %133 {strides = array<i32>} : memref<8x128xf32, #tpu.memory_space<vmem>>, vector<8x128xf32>,
      %135 = tpu.concatenate %130, %130 in 1 : vector<8x32xf32>, vector<8x32xf32> -> vector<8x64xf32>
      %c0_67 = arith.constant 0 : index
      %c0_68 = arith.constant 0 : index
      %136 = vector.load %arg12[%c0_67, %c0_68] : memref<8x64xf32, #tpu.memory_space<vmem>>, vector<8x64xf32>
      tpu.vector_store %arg12[%c0_67, %c0_68], %135 {strides = array<i32>} : memref<8x64xf32, #tpu.memory_space<vmem>>, vector<8x64xf32>,
      %cst_69 = arith.constant 0xFF800000 : f32
      %137 = vector.broadcast %cst_69 : f32 to vector<8x1xf32>
      %c0_70 = arith.constant 0 : index
      %c0_71 = arith.constant 0 : index
      %138 = vector.load %arg13[%c0_70, %c0_71] : memref<8x1xf32, #tpu.memory_space<vmem>>, vector<8x1xf32>
      tpu.vector_store %arg13[%c0_70, %c0_71], %137 {strides = array<i32>} : memref<8x1xf32, #tpu.memory_space<vmem>>, vector<8x1xf32>,
      %cst_72 = arith.constant 0.000000e+00 : f32
      %139 = vector.broadcast %cst_72 : f32 to vector<8x1xf32>
      %c0_73 = arith.constant 0 : index
      %c0_74 = arith.constant 0 : index
      %140 = vector.load %arg14[%c0_73, %c0_74] : memref<8x1xf32, #tpu.memory_space<vmem>>, vector<8x1xf32>
      tpu.vector_store %arg14[%c0_73, %c0_74], %139 {strides = array<i32>} : memref<8x1xf32, #tpu.memory_space<vmem>>, vector<8x1xf32>,
    } else {
    }
    %c0 = arith.constant 0 : index
    %c0_1 = arith.constant 0 : index
    %3 = vector.load %arg12[%c0, %c0_1] : memref<8x64xf32, #tpu.memory_space<vmem>>, vector<8x64xf32>
    %4 = arith.truncf %3 : vector<8x64xf32> to vector<8x64xbf16>
    %c0_2 = arith.constant 0 : index
    %c0_3 = arith.constant 0 : index
    %5 = vector.load %arg6[%c0_2, %c0_3] : memref<64x128xbf16, #tpu.memory_space<vmem>>, vector<64x128xbf16>
    %cst = arith.constant dense<0.000000e+00> : vector<8x128xf32>
    %6 = tpu.matmul %4, %5, %cst {dimension_numbers = #tpu.dot_dimension_numbers<[1], [0], [0], [1], [0, 0, 1, 1], [], []>} : vector<8x64xbf16>, vector<64x128xbf16>, vector<8x128xf32> -> vector<8x128xf32>
    %c0_4 = arith.constant 0 : index
    %c0_5 = arith.constant 0 : index
    %7 = vector.load %arg7[%c0_4, %c0_5] : memref<1x128xf32, #tpu.memory_space<vmem>>, vector<1x128xf32>
    %8 = vector.broadcast %7 : vector<1x128xf32> to vector<8x128xf32>
    %9 = arith.addf %6, %8 : vector<8x128xf32>
    %c0_6 = arith.constant 0 : index
    %c0_7 = arith.constant 0 : index
    %10 = vector.load %arg8[%c0_6, %c0_7] : memref<8x128xf32, #tpu.memory_space<vmem>>, vector<8x128xf32>
    tpu.vector_store %arg8[%c0_6, %c0_7], %9 {strides = array<i32>} : memref<8x128xf32, #tpu.memory_space<vmem>>, vector<8x128xf32>,
    %c0_8 = arith.constant 0 : index
    %c0_9 = arith.constant 0 : index
    %11 = vector.load %arg13[%c0_8, %c0_9] : memref<8x1xf32, #tpu.memory_space<vmem>>, vector<8x1xf32>
    %cst_10 = arith.constant dense<0xFF800000> : vector<8xf32>
    %12 = vector.multi_reduction <maximumf>, %9, %cst_10 [1] : vector<8x128xf32> to vector<8xf32>
    %13 = vector.shape_cast %12 : vector<8xf32> to vector<8x1xf32>
    %14 = arith.maximumf %11, %13 : vector<8x1xf32>
    %c0_11 = arith.constant 0 : index
    %c0_12 = arith.constant 0 : index
    %15 = vector.load %arg14[%c0_11, %c0_12] : memref<8x1xf32, #tpu.memory_space<vmem>>, vector<8x1xf32>
    %16 = arith.subf %11, %14 : vector<8x1xf32>
    %17 = math.exp %16 : vector<8x1xf32>
    %18 = arith.mulf %15, %17 : vector<8x1xf32>
    %19 = vector.broadcast %14 : vector<8x1xf32> to vector<8x128xf32>
    %20 = arith.subf %9, %19 : vector<8x128xf32>
    %21 = math.exp %20 : vector<8x128xf32>
    %cst_13 = arith.constant dense<0.000000e+00> : vector<8xf32>
    %22 = vector.multi_reduction <add>, %21, %cst_13 [1] : vector<8x128xf32> to vector<8xf32>
    %23 = vector.shape_cast %22 : vector<8xf32> to vector<8x1xf32>
    %24 = arith.addf %18, %23 : vector<8x1xf32>
    %c0_14 = arith.constant 0 : index
    %c0_15 = arith.constant 0 : index
    %25 = vector.load %arg14[%c0_14, %c0_15] : memref<8x1xf32, #tpu.memory_space<vmem>>, vector<8x1xf32>
    tpu.vector_store %arg14[%c0_14, %c0_15], %24 {strides = array<i32>} : memref<8x1xf32, #tpu.memory_space<vmem>>, vector<8x1xf32>,
    %c0_16 = arith.constant 0 : index
    %c0_17 = arith.constant 0 : index
    %26 = vector.load %arg13[%c0_16, %c0_17] : memref<8x1xf32, #tpu.memory_space<vmem>>, vector<8x1xf32>
    tpu.vector_store %arg13[%c0_16, %c0_17], %14 {strides = array<i32>} : memref<8x1xf32, #tpu.memory_space<vmem>>, vector<8x1xf32>,
    %c1_i32 = arith.constant 1 : i32
    %27 = arith.cmpi eq, %arg0, %c1_i32 : i32
    %28 = arith.extui %27 : i1 to i32
    %c0_i32_18 = arith.constant 0 : i32
    %29 = arith.cmpi ne, %28, %c0_i32_18 : i32
    scf.if %29 {
      %c0_19 = arith.constant 0 : index
      %c0_20 = arith.constant 0 : index
      %30 = vector.load %arg13[%c0_19, %c0_20] : memref<8x1xf32, #tpu.memory_space<vmem>>, vector<8x1xf32>
      %c0_21 = arith.constant 0 : index
      %c0_22 = arith.constant 0 : index
      %31 = vector.load %arg14[%c0_21, %c0_22] : memref<8x1xf32, #tpu.memory_space<vmem>>, vector<8x1xf32>
      %32 = math.log %31 : vector<8x1xf32>
      %33 = arith.addf %30, %32 : vector<8x1xf32>
      %c0_23 = arith.constant 0 : index
      %c0_24 = arith.constant 0 : index
      %34 = vector.load %arg11[%c0_23, %c0_24] : memref<8x1xf32, #tpu.memory_space<vmem>>, vector<8x1xf32>
      tpu.vector_store %arg11[%c0_23, %c0_24], %33 {strides = array<i32>} : memref<8x1xf32, #tpu.memory_space<vmem>>, vector<8x1xf32>,
    } else {
    }
    return
  }
  func.func @transform_0(%arg0: i32) -> (i32, i32) {
    %c0_i32 = arith.constant 0 : i32
    %c0_i32_0 = arith.constant 0 : i32
    %c0_i32_1 = arith.constant 0 : i32
    return %c0_i32, %c0_i32_0 : i32, i32
  }
  func.func @transform_1(%arg0: i32) -> (i32, i32) {
    %c0_i32 = arith.constant 0 : i32
    %c0_i32_0 = arith.constant 0 : i32
    %c0_i32_1 = arith.constant 0 : i32
    return %c0_i32, %c0_i32_0 : i32, i32
  }
  func.func @transform_2(%arg0: i32) -> (i32, i32) {
    %c0_i32 = arith.constant 0 : i32
    %c0_i32_0 = arith.constant 0 : i32
    %c0_i32_1 = arith.constant 0 : i32
    return %c0_i32, %c0_i32_0 : i32, i32
  }
  func.func @transform_3(%arg0: i32) -> (i32, i32, i32) {
    %c0_i32 = arith.constant 0 : i32
    %c0_i32_0 = arith.constant 0 : i32
    %c0_i32_1 = arith.constant 0 : i32
    %c0_i32_2 = arith.constant 0 : i32
    return %c0_i32, %c0_i32_0, %c0_i32_1 : i32, i32, i32
  }
  func.func @transform_4(%arg0: i32) -> (i32, i32, i32) {
    %c0_i32 = arith.constant 0 : i32
    %c0_i32_0 = arith.constant 0 : i32
    %c0_i32_1 = arith.constant 0 : i32
    %c0_i32_2 = arith.constant 0 : i32
    return %c0_i32, %c0_i32_0, %c0_i32_1 : i32, i32, i32
  }
  func.func @transform_5(%arg0: i32) -> (i32, i32) {
    %c0_i32 = arith.constant 0 : i32
    %c0_i32_0 = arith.constant 0 : i32
    return %c0_i32, %arg0 : i32, i32
  }
  func.func @transform_6(%arg0: i32) -> (i32, i32) {
    %c0_i32 = arith.constant 0 : i32
    %c0_i32_0 = arith.constant 0 : i32
    return %c0_i32, %arg0 : i32, i32
  }
  func.func @transform_7(%arg0: i32) -> (i32, i32) {
    %c0_i32 = arith.constant 0 : i32
    %c0_i32_0 = arith.constant 0 : i32
    return %c0_i32, %arg0 : i32, i32
  }
  func.func @transform_8(%arg0: i32) -> (i32, i32) {
    %c0_i32 = arith.constant 0 : i32
    %c0_i32_0 = arith.constant 0 : i32
    %c0_i32_1 = arith.constant 0 : i32
    return %c0_i32, %c0_i32_0 : i32, i32
  }
  func.func @transform_9(%arg0: i32) -> (i32, i32) {
    %c0_i32 = arith.constant 0 : i32
    %c0_i32_0 = arith.constant 0 : i32
    %c0_i32_1 = arith.constant 0 : i32
    return %c0_i32, %c0_i32_0 : i32, i32
  }
  func.func @transform_10(%arg0: i32) -> (i32, i32) {
    %c0_i32 = arith.constant 0 : i32
    %c0_i32_0 = arith.constant 0 : i32
    %c0_i32_1 = arith.constant 0 : i32
    return %c0_i32, %c0_i32_0 : i32, i32
  }
}

</mosaic_0001>

<llo_original>
// kernel: tpu_custom_call.1
$region0: #{tpu_custom_call.1}
  #allocation0 [shape = 'u32[]', space=smem, size = 0x4, offset = 0x4, fixed_abs, tag = 'smem constant byte address 0x4 - core index']
  #allocation1 [shape = 'u32[72,128]{1,0:T(1,128)}', space=vmem, size = 0x9000, scoped, tag = 'internal scratch']
  #allocation2 [shape = 'f32[8,64]{1,0:T(8,128)}', space=vmem, size = 0x1000, scoped, tag = 'scratch operand']
  #allocation3 [shape = 'f32[8,1]{1,0:T(8,128)}', space=vmem, size = 0x1000, scoped, tag = 'scratch operand']
  #allocation4 [shape = 'f32[8,1]{1,0:T(8,128)}', space=vmem, size = 0x1000, scoped, tag = 'scratch operand']
  %s0 = inlined_call_operand.vmem [shape: f32[8,32], index: 0, kind: input, shape index: {}]
  %s1 = inlined_call_operand.vmem [shape: f32[8,128], index: 1, kind: input, shape index: {}, may-alias: {1,8}]
  %s2 = inlined_call_operand.vmem [shape: f32[8,128], index: 2, kind: input, shape index: {}, may-alias: {2,9}]
  %s3 = inlined_call_operand.hbm [shape: f32[4,64,128], index: 3, kind: input, shape index: {}]
  %s4 = inlined_call_operand.vmem [shape: f32[4,1,128], index: 4, kind: input, shape index: {}]
  %s5 = inlined_call_operand.hbm [shape: bf16[64,256], index: 5, kind: input, shape index: {}]
  %s6 = inlined_call_operand.vmem [shape: f32[1,256], index: 6, kind: input, shape index: {}]
  %s7 = inlined_call_operand.hbm [shape: f32[8,256], index: 7, kind: output, shape index: {0}]
  %s8 = inlined_call_operand.vmem [shape: f32[8,128], index: 8, kind: output, shape index: {1}, may-alias: {1,8}]
  %s9 = inlined_call_operand.vmem [shape: f32[8,128], index: 9, kind: output, shape index: {2}, may-alias: {2,9}]
  %s10 = inlined_call_operand.vmem [shape: f32[8,1], index: 10, kind: output, shape index: {3}]
  %11 = xla_tuple %s7, %s8, %s9, %s10
  %s12 = sld [smem:[#allocation0]]
  $region101: #{tpu_custom_call.1} parent=0
    _
  %s14 = ssub.s32 1, %s12
  %s15 = scalar_select 0, %s14, %s12
  $region1: #{tpu_custom_call.1} parent=0
    #allocation5 [shape = 'u8[131072]{0}', space=vmem, size = 0x20000, scoped, tag = 'input window, operand 3, single buffered']
    #allocation6 [shape = 's32[2]{0}', space=sflag, size = 0x8, scoped, tag = 'scoped memory for tpu_custom_call.1']
    #allocation7 [shape = 's32[2]{0}', space=sflag, size = 0x8, scoped, tag = 'scoped memory for tpu_custom_call.1']
    #allocation8 [shape = 'u8[32768]{0}', space=vmem, size = 0x8000, scoped, tag = 'input window, operand 5']
    #allocation9 [shape = 's32[2]{0}', space=sflag, size = 0x8, scoped, tag = 'scoped memory for tpu_custom_call.1']
    #allocation10 [shape = 'u8[8192]{0}', space=vmem, size = 0x2000, scoped, tag = 'output window, operand 0']
    %16 = vsyncpa [#allocation6], 0
    %17 = vsyncpa [#allocation9], 0
    %s18 = scalar_lea.sflag [#allocation9], 1
    %19 = vsyncpa %s18, 0
    %20 = vsyncpa [#allocation7], 0
    %s21 = scalar_lea.sflag [#allocation7], 1
    %22 = vsyncpa %s21, 0
    loop: start=0, step=1, limit=4
    $region2: #{tpu_custom_call.1} parent=1 // loop_pre_header
      _
    $region3: #{tpu_custom_call.1} parent=1 // loop_header
      %s24 = sphi 0, %s28
      %p25 = scmp.ge.s32.totalorder %s24, 4
      %s32 = sphi 0, %s32
      %s34 = sphi 0, %s32
      %s35 = sphi 0, %s34
      %s49 = sphi 0, %s35
      %s53 = sphi 0, %s53
      %s55 = sphi 0, %s53
      %s56 = sphi 0, %s55
      %s70 = sphi 0, %s56
      %s74 = sphi 0, %s74
      %s76 = sphi 0, %s74
      %s77 = sphi 0, %s76
      %s91 = sphi 0, %s77
      %s95 = sphi 0, %s95
      %s97 = sphi 0, %s95
      %s98 = sphi 0, %s97
      %s112 = sphi 0, %s98
      %s116 = sphi 0, %s116
      %s118 = sphi 0, %s116
      %s119 = sphi 0, %s118
      %s133 = sphi 0, %s119
      %s139 = sphi 0, %s141
      %s142 = sphi 0, %s139
      %s143 = sphi 0, %s142
      %s159 = sphi 0, %s143
      %s165 = sphi 0, %s167
      %s168 = sphi 0, %s165
      %s169 = sphi 0, %s168
      %s185 = sphi 0, %s169
      %s191 = sphi 0, %s193
      %s194 = sphi 0, %s191
      %s195 = sphi 0, %s194
      %s211 = sphi 0, %s195
      %s215 = sphi 0, %s215
      %s217 = sphi 0, %s215
      %s218 = sphi 0, %s217
      %s232 = sphi 0, %s218
      %s236 = sphi 0, %s236
      %s238 = sphi 0, %s236
      %s239 = sphi 0, %s238
      %s253 = sphi 0, %s239
      %s257 = sphi 0, %s257
      %s259 = sphi 0, %s257
      %s260 = sphi 0, %s259
      %s274 = sphi 0, %s260
    $region4: #{tpu_custom_call.1} parent=1 // loop_header_branch
      %27 = sbr.rel (%p25) target = $region8
    $region5: #{tpu_custom_call.1} parent=1 // loop_body
      %s29 = ssub.s32 %s24, 1
      %s30 = ssub.s32 %s24, 2
      %s31 = sadd.s32 %s24, 1
      %s33 = sadd.s32 %s32, 1
      %p36 = scmp.eq.s32.totalorder %s24, 1
      %p37 = scmp.ne.s32.totalorder %s32, %s34
      %p38 = scmp.eq.s32.totalorder %s24, 0
      %p39 = por %p37, %p38
      %p40 = scmp.ne.s32.totalorder %s32, %s34
      %p41 = scmp.eq.s32.totalorder %s29, 1
      %p42 = por %p40, %p41
      %p43 = scmp.ne.s32.totalorder %s34, %s35
      %p44 = scmp.eq.s32.totalorder %s29, 0
      %p45 = por %p43, %p44
      %p46 = scmp.ne.s32.totalorder %s34, %s35
      %p47 = scmp.eq.s32.totalorder %s30, 1
      %p48 = por %p46, %p47
      %p50 = scmp.ne.s32.totalorder %s35, %s49
      %p51 = scmp.eq.s32.totalorder %s30, 0
      %p52 = por %p50, %p51
      %s54 = sadd.s32 %s53, 1
      %p57 = scmp.eq.s32.totalorder %s24, 1
      %p58 = scmp.ne.s32.totalorder %s53, %s55
      %p59 = scmp.eq.s32.totalorder %s24, 0
      %p60 = por %p58, %p59
      %p61 = scmp.ne.s32.totalorder %s53, %s55
      %p62 = scmp.eq.s32.totalorder %s29, 1
      %p63 = por %p61, %p62
      %p64 = scmp.ne.s32.totalorder %s55, %s56
      %p65 = scmp.eq.s32.totalorder %s29, 0
      %p66 = por %p64, %p65
      %p67 = scmp.ne.s32.totalorder %s55, %s56
      %p68 = scmp.eq.s32.totalorder %s30, 1
      %p69 = por %p67, %p68
      %p71 = scmp.ne.s32.totalorder %s56, %s70
      %p72 = scmp.eq.s32.totalorder %s30, 0
      %p73 = por %p71, %p72
      %s75 = sadd.s32 %s74, 1
      %p78 = scmp.eq.s32.totalorder %s24, 1
      %p79 = scmp.ne.s32.totalorder %s74, %s76
      %p80 = scmp.eq.s32.totalorder %s24, 0
      %p81 = por %p79, %p80
      %p82 = scmp.ne.s32.totalorder %s74, %s76
      %p83 = scmp.eq.s32.totalorder %s29, 1
      %p84 = por %p82, %p83
      %p85 = scmp.ne.s32.totalorder %s76, %s77
      %p86 = scmp.eq.s32.totalorder %s29, 0
      %p87 = por %p85, %p86
      %p88 = scmp.ne.s32.totalorder %s76, %s77
      %p89 = scmp.eq.s32.totalorder %s30, 1
      %p90 = por %p88, %p89
      %p92 = scmp.ne.s32.totalorder %s77, %s91
      %p93 = scmp.eq.s32.totalorder %s30, 0
      %p94 = por %p92, %p93
      %s96 = sadd.s32 %s95, 1
      %p99 = scmp.eq.s32.totalorder %s24, 1
      %p100 = scmp.ne.s32.totalorder %s95, %s97
      %p101 = scmp.eq.s32.totalorder %s24, 0
      %p102 = por %p100, %p101
      %p103 = scmp.ne.s32.totalorder %s95, %s97
      %p104 = scmp.eq.s32.totalorder %s29, 1
      %p105 = por %p103, %p104
      %p106 = scmp.ne.s32.totalorder %s97, %s98
      %p107 = scmp.eq.s32.totalorder %s29, 0
      %p108 = por %p106, %p107
      %p109 = scmp.ne.s32.totalorder %s97, %s98
      %p110 = scmp.eq.s32.totalorder %s30, 1
      %p111 = por %p109, %p110
      %p113 = scmp.ne.s32.totalorder %s98, %s112
      %p114 = scmp.eq.s32.totalorder %s30, 0
      %p115 = por %p113, %p114
      %s117 = sadd.s32 %s116, 1
      %p120 = scmp.eq.s32.totalorder %s24, 1
      %p121 = scmp.ne.s32.totalorder %s116, %s118
      %p122 = scmp.eq.s32.totalorder %s24, 0
      %p123 = por %p121, %p122
      %p124 = scmp.ne.s32.totalorder %s116, %s118
      %p125 = scmp.eq.s32.totalorder %s29, 1
      %p126 = por %p124, %p125
      %p127 = scmp.ne.s32.totalorder %s118, %s119
      %p128 = scmp.eq.s32.totalorder %s29, 0
      %p129 = por %p127, %p128
      %p130 = scmp.ne.s32.totalorder %s118, %s119
      %p131 = scmp.eq.s32.totalorder %s30, 1
      %p132 = por %p130, %p131
      %p134 = scmp.ne.s32.totalorder %s119, %s133
      %p135 = scmp.eq.s32.totalorder %s30, 0
      %p136 = por %p134, %p135
      %s137 = ssub.s32 %s24, %s31
      %p138 = scmp.eq.s32.totalorder %s137, 0
      %s140 = sadd.s32 %s139, 1
      %s141 = scalar_select %p138, %s139, %s140
      %p144 = pneg %p138
      %p145 = scmp.eq.s32.totalorder %s24, 1
      %p146 = por %p144, %p145
      %p147 = scmp.ne.s32.totalorder %s139, %s142
      %p148 = scmp.eq.s32.totalorder %s24, 0
      %p149 = por %p147, %p148
      %p150 = scmp.ne.s32.totalorder %s139, %s142
      %p151 = scmp.eq.s32.totalorder %s29, 1
      %p152 = por %p150, %p151
      %p153 = scmp.ne.s32.totalorder %s142, %s143
      %p154 = scmp.eq.s32.totalorder %s29, 0
      %p155 = por %p153, %p154
      %p156 = scmp.ne.s32.totalorder %s142, %s143
      %p157 = scmp.eq.s32.totalorder %s30, 1
      %p158 = por %p156, %p157
      %p160 = scmp.ne.s32.totalorder %s143, %s159
      %p161 = scmp.eq.s32.totalorder %s30, 0
      %p162 = por %p160, %p161
      %s163 = ssub.s32 %s24, %s31
      %p164 = scmp.eq.s32.totalorder %s163, 0
      %s166 = sadd.s32 %s165, 1
      %s167 = scalar_select %p164, %s165, %s166
      %p170 = pneg %p164
      %p171 = scmp.eq.s32.totalorder %s24, 1
      %p172 = por %p170, %p171
      %p173 = scmp.ne.s32.totalorder %s165, %s168
      %p174 = scmp.eq.s32.totalorder %s24, 0
      %p175 = por %p173, %p174
      %p176 = scmp.ne.s32.totalorder %s165, %s168
      %p177 = scmp.eq.s32.totalorder %s29, 1
      %p178 = por %p176, %p177
      %p179 = scmp.ne.s32.totalorder %s168, %s169
      %p180 = scmp.eq.s32.totalorder %s29, 0
      %p181 = por %p179, %p180
      %p182 = scmp.ne.s32.totalorder %s168, %s169
      %p183 = scmp.eq.s32.totalorder %s30, 1
      %p184 = por %p182, %p183
      %p186 = scmp.ne.s32.totalorder %s169, %s185
      %p187 = scmp.eq.s32.totalorder %s30, 0
      %p188 = por %p186, %p187
      %s189 = ssub.s32 %s24, %s31
      %p190 = scmp.eq.s32.totalorder %s189, 0
      %s192 = sadd.s32 %s191, 1
      %s193 = scalar_select %p190, %s191, %s192
      %p196 = pneg %p190
      %p197 = scmp.eq.s32.totalorder %s24, 1
      %p198 = por %p196, %p197
      %p199 = scmp.ne.s32.totalorder %s191, %s194
      %p200 = scmp.eq.s32.totalorder %s24, 0
      %p201 = por %p199, %p200
      %p202 = scmp.ne.s32.totalorder %s191, %s194
      %p203 = scmp.eq.s32.totalorder %s29, 1
      %p204 = por %p202, %p203
      %p205 = scmp.ne.s32.totalorder %s194, %s195
      %p206 = scmp.eq.s32.totalorder %s29, 0
      %p207 = por %p205, %p206
      %p208 = scmp.ne.s32.totalorder %s194, %s195
      %p209 = scmp.eq.s32.totalorder %s30, 1
      %p210 = por %p208, %p209
      %p212 = scmp.ne.s32.totalorder %s195, %s211
      %p213 = scmp.eq.s32.totalorder %s30, 0
      %p214 = por %p212, %p213
      %s216 = sadd.s32 %s215, 1
      %p219 = scmp.eq.s32.totalorder %s24, 1
      %p220 = scmp.ne.s32.totalorder %s215, %s217
      %p221 = scmp.eq.s32.totalorder %s24, 0
      %p222 = por %p220, %p221
      %p223 = scmp.ne.s32.totalorder %s215, %s217
      %p224 = scmp.eq.s32.totalorder %s29, 1
      %p225 = por %p223, %p224
      %p226 = scmp.ne.s32.totalorder %s217, %s218
      %p227 = scmp.eq.s32.totalorder %s29, 0
      %p228 = por %p226, %p227
      %p229 = scmp.ne.s32.totalorder %s217, %s218
      %p230 = scmp.eq.s32.totalorder %s30, 1
      %p231 = por %p229, %p230
      %p233 = scmp.ne.s32.totalorder %s218, %s232
      %p234 = scmp.eq.s32.totalorder %s30, 0
      %p235 = por %p233, %p234
      %s237 = sadd.s32 %s236, 1
      %p240 = scmp.eq.s32.totalorder %s24, 1
      %p241 = scmp.ne.s32.totalorder %s236, %s238
      %p242 = scmp.eq.s32.totalorder %s24, 0
      %p243 = por %p241, %p242
      %p244 = scmp.ne.s32.totalorder %s236, %s238
      %p245 = scmp.eq.s32.totalorder %s29, 1
      %p246 = por %p244, %p245
      %p247 = scmp.ne.s32.totalorder %s238, %s239
      %p248 = scmp.eq.s32.totalorder %s29, 0
      %p249 = por %p247, %p248
      %p250 = scmp.ne.s32.totalorder %s238, %s239
      %p251 = scmp.eq.s32.totalorder %s30, 1
      %p252 = por %p250, %p251
      %p254 = scmp.ne.s32.totalorder %s239, %s253
      %p255 = scmp.eq.s32.totalorder %s30, 0
      %p256 = por %p254, %p255
      %s258 = sadd.s32 %s257, 1
      %p261 = scmp.eq.s32.totalorder %s24, 1
      %p262 = scmp.ne.s32.totalorder %s257, %s259
      %p263 = scmp.eq.s32.totalorder %s24, 0
      %p264 = por %p262, %p263
      %p265 = scmp.ne.s32.totalorder %s257, %s259
      %p266 = scmp.eq.s32.totalorder %s29, 1
      %p267 = por %p265, %p266
      %p268 = scmp.ne.s32.totalorder %s259, %s260
      %p269 = scmp.eq.s32.totalorder %s29, 0
      %p270 = por %p268, %p269
      %p271 = scmp.ne.s32.totalorder %s259, %s260
      %p272 = scmp.eq.s32.totalorder %s30, 1
      %p273 = por %p271, %p272
      %p275 = scmp.ne.s32.totalorder %s260, %s274
      %p276 = scmp.eq.s32.totalorder %s30, 0
      %p277 = por %p275, %p276
      %p278 = scmp.le.s32.totalorder 1, %s24
      %p279 = scmp.lt.s32.totalorder %s24, 3
      %p280 = pnand %p278, %p279
      %p281 = pneg %p280
      // Predicated region
      $region9: #{tpu_custom_call.1} parent=5 // pred_check
        _
      $region10: #{tpu_custom_call.1} parent=5 // pred_check_branch
        %283 = sbr.rel (%p280) target = $region12
      $region11: #{tpu_custom_call.1} parent=5 // pred_region
        %s284 = ssub.s32 %s24, 1
        // Predicated region
        $region13: #{tpu_custom_call.1} parent=11 // pred_check
          %p285 = pneg %p45
        $region14: #{tpu_custom_call.1} parent=11 // pred_check_branch
          %287 = sbr.rel (%p285) target = $region16
        $region15: #{tpu_custom_call.1} parent=11 // pred_region
          _
        $region16: #{tpu_custom_call.1} parent=11 // pred_fallthru
          _
        // Predicated region
        $region17: #{tpu_custom_call.1} parent=11 // pred_check
          %p288 = pneg %p66
        $region18: #{tpu_custom_call.1} parent=11 // pred_check_branch
          %290 = sbr.rel (%p288) target = $region20
        $region19: #{tpu_custom_call.1} parent=11 // pred_region
          _
        $region20: #{tpu_custom_call.1} parent=11 // pred_fallthru
          _
        // Predicated region
        $region21: #{tpu_custom_call.1} parent=11 // pred_check
          %p291 = pneg %p87
        $region22: #{tpu_custom_call.1} parent=11 // pred_check_branch
          %293 = sbr.rel (%p291) target = $region24
        $region23: #{tpu_custom_call.1} parent=11 // pred_region
          _
        $region24: #{tpu_custom_call.1} parent=11 // pred_fallthru
          _
        // Predicated region
        $region25: #{tpu_custom_call.1} parent=11 // pred_check
          %p294 = pneg %p108
        $region26: #{tpu_custom_call.1} parent=11 // pred_check_branch
          %296 = sbr.rel (%p294) target = $region28
        $region27: #{tpu_custom_call.1} parent=11 // pred_region
          %298 = vsyncadd [#allocation6], 0
          %s299 = sshll.u32 %s3, 4
          %s300 = int_to_ptr.hbm [resolvable:$true] %s299
          %s301 = sshll.u32 [#allocation5], 4
          %s302 = int_to_ptr.vmem [resolvable:$true] %s301
          %307 = dma.hbm_to_vmem [thread:$0]  %s300, 4096, %s302, [#allocation6], 128, 128, 8
        $region28: #{tpu_custom_call.1} parent=11 // pred_fallthru
          _
        // Predicated region
        $region29: #{tpu_custom_call.1} parent=11 // pred_check
          %p308 = pneg %p129
        $region30: #{tpu_custom_call.1} parent=11 // pred_check_branch
          %310 = sbr.rel (%p308) target = $region32
        $region31: #{tpu_custom_call.1} parent=11 // pred_region
          _
        $region32: #{tpu_custom_call.1} parent=11 // pred_fallthru
          _
      $region12: #{tpu_custom_call.1} parent=5 // pred_fallthru
        _
      %p311 = scmp.lt.s32.totalorder %s24, 2
      // Predicated region
      $region33: #{tpu_custom_call.1} parent=5 // pred_check
        %p312 = pneg %p311
      $region34: #{tpu_custom_call.1} parent=5 // pred_check_branch
        %314 = sbr.rel (%p312) target = $region36
      $region35: #{tpu_custom_call.1} parent=5 // pred_region
        // Predicated region
        $region37: #{tpu_custom_call.1} parent=35 // pred_check
          %p315 = pneg %p149
        $region38: #{tpu_custom_call.1} parent=35 // pred_check_branch
          %317 = sbr.rel (%p315) target = $region40
        $region39: #{tpu_custom_call.1} parent=35 // pred_region
          %s318 = sand.u32 %s139, 1
          %s319 = scalar_lea.sflag [#allocation9], %s318
          %s320 = sand.u32 %s139, 1
          %s321 = smul.addr %s320, 32
          %s322 = scalar_lea.vmem [#allocation8], %s321
          %324 = vsyncadd %s319, 0
          %s325 = smul.addr %s24, 4
          %s326 = scalar_lea.hbm %s5, %s325
          %s327 = sshll.u32 %s326, 4
          %s328 = int_to_ptr.hbm [resolvable:$true] %s327
          %s329 = sshll.u32 %s322, 4
          %s330 = int_to_ptr.vmem [resolvable:$true] %s329
          %335 = dma.hbm_to_vmem [thread:$0]  %s328, 512, %s330, %s319, 128, 64, 4
        $region40: #{tpu_custom_call.1} parent=35 // pred_fallthru
          _
        // Predicated region
        $region41: #{tpu_custom_call.1} parent=35 // pred_check
          %p336 = pneg %p175
        $region42: #{tpu_custom_call.1} parent=35 // pred_check_branch
          %338 = sbr.rel (%p336) target = $region44
        $region43: #{tpu_custom_call.1} parent=35 // pred_region
          %p339 = scmp.lt.s32.totalorder %s24, 1
          %s340 = scalar_select %p339, %s24, 1
          %s341 = scalar_lea.vmem %s6, %s340
        $region44: #{tpu_custom_call.1} parent=35 // pred_fallthru
          _
      $region36: #{tpu_custom_call.1} parent=5 // pred_fallthru
        _
      %p342 = scmp.le.s32.totalorder 1, %s24
      %p343 = scmp.lt.s32.totalorder %s24, 3
      %p344 = pnand %p342, %p343
      %p345 = pneg %p344
      // Predicated region
      $region45: #{tpu_custom_call.1} parent=5 // pred_check
        _
      $region46: #{tpu_custom_call.1} parent=5 // pred_check_branch
        %347 = sbr.rel (%p344) target = $region48
      $region47: #{tpu_custom_call.1} parent=5 // pred_region
        %s348 = ssub.s32 %s24, 1
        // Predicated region
        $region49: #{tpu_custom_call.1} parent=47 // pred_check
          %p349 = pneg %p108
        $region50: #{tpu_custom_call.1} parent=47 // pred_check_branch
          %351 = sbr.rel (%p349) target = $region52
        $region51: #{tpu_custom_call.1} parent=47 // pred_region
          %353 = dma.done [#allocation6], 4096
        $region52: #{tpu_custom_call.1} parent=47 // pred_fallthru
          _
        %s354 = sand.u32 %s142, 1
        %s355 = scalar_lea.sflag [#allocation9], %s354
        %s356 = sand.u32 %s142, 1
        %s357 = smul.addr %s356, 32
        %s358 = scalar_lea.vmem [#allocation8], %s357
        // Predicated region
        $region53: #{tpu_custom_call.1} parent=47 // pred_check
          %p359 = pneg %p155
        $region54: #{tpu_custom_call.1} parent=47 // pred_check_branch
          %361 = sbr.rel (%p359) target = $region56
        $region55: #{tpu_custom_call.1} parent=47 // pred_region
          %363 = dma.done %s355, 512
        $region56: #{tpu_custom_call.1} parent=47 // pred_fallthru
          _
        %p364 = pneg %p45
        %p365 = pneg %p42
        %p366 = pneg %p66
        %p367 = pneg %p63
        %p368 = pneg %p87
        %p369 = pneg %p84
        %p370 = pneg %p108
        %p371 = pneg %p105
        %p372 = pneg %p129
        %p373 = pneg %p126
        %s374 = sand.u32 %s142, 1
        %s375 = scalar_lea.sflag [#allocation9], %s374
        %s376 = sand.u32 %s142, 1
        %s377 = smul.addr %s376, 32
        %s378 = scalar_lea.vmem [#allocation8], %s377
        %p379 = pneg %p155
        %p380 = pneg %p152
        %p381 = scmp.lt.s32.totalorder %s29, 1
        %s382 = scalar_select %p381, %s29, 1
        %s383 = scalar_lea.vmem %s6, %s382
        %p384 = pneg %p181
        %p385 = pneg %p178
        %p386 = pneg %p207
        %p387 = pneg %p204
        %s388 = sand.u32 %s194, 1
        %s389 = scalar_lea.sflag [#allocation7], %s388
        %s390 = sand.u32 %s194, 1
        %s391 = smul.addr %s390, 8
        %s392 = scalar_lea.vmem [#allocation10], %s391
        %p393 = pneg %p228
        %p394 = pneg %p225
        %p395 = pneg %p249
        %p396 = pneg %p246
        %p397 = pneg %p270
        %p398 = pneg %p267
        %p399 = scmp.lt.s32.totalorder %s29, 1
        %s400 = scalar_select %p399, %s29, 1
        %s401 = scalar_lea.vmem %s6, %s400
        %p403 = scmp.eq.s32.totalorder %s29, 0
        // Predicated region
        $region57: #{tpu_custom_call.1} parent=47 // pred_check
          %p404 = pneg %p403
        $region58: #{tpu_custom_call.1} parent=47 // pred_check_branch
          %406 = sbr.rel (%p404) target = $region60
        $region59: #{tpu_custom_call.1} parent=47 // pred_region
          %v407 = vld [vmem:[%s0] sm:$0xff]
          %v408 = vld [vmem:[%s1] sm:$0xff]
          %v409 = vld [vmem:[%s2] sm:$0xff]
          %411 = vrot.lane.b32.xlu0 %v408, 32
          %v412 = vpop.permute.xlu0 %411
          %vm414 = vcmask 261120
          %v415 = vsel %vm414, %v407, %v412
          %v416 = vld [vmem:[#allocation5] sm:$0xff]
          %v417 = vld [vmem:[#allocation5 + $0x8] sm:$0xff]
          %v418 = vld [vmem:[#allocation5 + $0x10] sm:$0xff]
          %v419 = vld [vmem:[#allocation5 + $0x18] sm:$0xff]
          %v420 = vld [vmem:[#allocation5 + $0x20] sm:$0xff]
          %v421 = vld [vmem:[#allocation5 + $0x28] sm:$0xff]
          %v422 = vld [vmem:[#allocation5 + $0x30] sm:$0xff]
          %v423 = vld [vmem:[#allocation5 + $0x38] sm:$0xff]
          %v424 = vld [vmem:[%s4] sm:$0x1]
          %v426 = vperm.slane %v424, 0
          %vm428 = vcmask 523264
          %v430 = vsel %vm428, %v415, 0
          %432 = vmatpush.msra.mxu0 0.0
          %433 = vmatpush.msra.mxu0 0.0
          %434 = vmatpush.msra.mxu0 0.0
          %435 = vmatpush.msra.mxu0 0.0
          %436 = vmatpush.msra.mxu0 0.0
          %437 = vmatpush.msra.mxu0 0.0
          %438 = vmatpush.msra.mxu0 0.0
          %439 = vmatpush.msra.mxu0 0.0
          %440 = vmatpush.msra.mxu0 %v423
          %441 = vmatpush.msra.mxu0 %v422
          %442 = vmatpush.msra.mxu0 %v421
          %443 = vmatpush.msra.mxu0 %v420
          %444 = vmatpush.msra.mxu0 %v419
          %445 = vmatpush.msra.mxu0 %v418
          %446 = vmatpush.msra.mxu0 %v417
          %447 = vmatpush.msra.mxu0 %v416
          %448 = vmatmul.f32.gmra.mxu0 %v430
          %v449 = vpop.f32.mrf.mxu0
          %v450 = vadd.f32 %v426, %v449
          %451 = vdwg.mxu0
          %v452 = vxor.u32 %v450, 2147483648
          %v453 = vmul.f32 %v452, 1.442695
          %v454 = vpow.pop %v453
          %v455 = vadd.f32 %v454, 1.0
          %v456 = vrcp.pop %v455
          %v457 = vmul.f32 %v455, %v456
          %v458 = vsub.f32 1.0, %v457
          %v459 = vmul.f32 %v456, %v458
          %v460 = vadd.f32 %v456, %v459
          %vm461 = vweird.f32 %v455
          %vm462 = vweird.f32 %v456
          %vm463 = vmor %vm461, %vm462
          %v464 = vsel %vm463, %v456, %v460
          %v465 = vand.u32 2147483647, %v455
          %vm466 = vcmp.eq.f32.partialorder %v465, 8.507059e+37
          %v467 = vand.u32 %v455, 2147483648
          %v468 = vor.u32 1.1754944e-38, %v467
          %v469 = vsel %vm466, %v468, %v464
          %v470 = vmul.f32 1.0, %v469
          %v471 = vtanh.pop %v450
          %473 = vrot.lane.b32.xlu0 %v409, 32
          %v474 = vpop.permute.xlu0 %473
          %v476 = vmul.f32 %v470, %v474
          %478 = vrot.lane.b32.xlu0 %v471, 64
          %v479 = vpop.permute.xlu0 %478
          %v481 = vmul.f32 %v470, %v479
          %483 = vrot.lane.b32.xlu0 %v481, 32
          %v484 = vpop.permute.xlu0 %483
          %v486 = vadd.f32 %v476, %v484
          %v487 = vtanh.pop %v486
          %489 = vrot.lane.b32.xlu0 %v487, 64
          %v490 = vpop.permute.xlu0 %489
          %v492 = vmul.f32 %v470, %v490
          %494 = vrot.lane.b32.xlu0 %v492, 32
          %v495 = vpop.permute.xlu0 %494
          %v497 = vsel %vm414, %v495, %v408
          %s498 = scalar_lea.vmem [#allocation5], 64
          %v499 = vld [vmem:[%s498] sm:$0xff]
          %v500 = vld [vmem:[%s498 + $0x8] sm:$0xff]
          %v501 = vld [vmem:[%s498 + $0x10] sm:$0xff]
          %v502 = vld [vmem:[%s498 + $0x18] sm:$0xff]
          %v503 = vld [vmem:[%s498 + $0x20] sm:$0xff]
          %v504 = vld [vmem:[%s498 + $0x28] sm:$0xff]
          %v505 = vld [vmem:[%s498 + $0x30] sm:$0xff]
          %v506 = vld [vmem:[%s498 + $0x38] sm:$0xff]
          %s507 = scalar_lea.vmem %s4, 1
          %v508 = vld [vmem:[%s507] sm:$0x1]
          %v510 = vperm.slane %v508, 0
          %v513 = vsel %vm428, %v497, 0
          %515 = vmatpush.msra.mxu0 0.0
          %516 = vmatpush.msra.mxu0 0.0
          %517 = vmatpush.msra.mxu0 0.0
          %518 = vmatpush.msra.mxu0 0.0
          %519 = vmatpush.msra.mxu0 0.0
          %520 = vmatpush.msra.mxu0 0.0
          %521 = vmatpush.msra.mxu0 0.0
          %522 = vmatpush.msra.mxu0 0.0
          %523 = vmatpush.msra.mxu0 %v506
          %524 = vmatpush.msra.mxu0 %v505
          %525 = vmatpush.msra.mxu0 %v504
          %526 = vmatpush.msra.mxu0 %v503
          %527 = vmatpush.msra.mxu0 %v502
          %528 = vmatpush.msra.mxu0 %v501
          %529 = vmatpush.msra.mxu0 %v500
          %530 = vmatpush.msra.mxu0 %v499
          %531 = vmatmul.f32.gmra.mxu0 %v513
          %v532 = vpop.f32.mrf.mxu0
          %v533 = vadd.f32 %v510, %v532
          %534 = vdwg.mxu0
          %v535 = vxor.u32 %v533, 2147483648
          %v536 = vmul.f32 %v535, 1.442695
          %v537 = vpow.pop %v536
          %v538 = vadd.f32 %v537, 1.0
          %v539 = vrcp.pop %v538
          %v540 = vmul.f32 %v538, %v539
          %v541 = vsub.f32 1.0, %v540
          %v542 = vmul.f32 %v539, %v541
          %v543 = vadd.f32 %v539, %v542
          %vm544 = vweird.f32 %v538
          %vm545 = vweird.f32 %v539
          %vm546 = vmor %vm544, %vm545
          %v547 = vsel %vm546, %v539, %v543
          %v548 = vand.u32 2147483647, %v538
          %vm549 = vcmp.eq.f32.partialorder %v548, 8.507059e+37
          %v550 = vand.u32 %v538, 2147483648
          %v551 = vor.u32 1.1754944e-38, %v550
          %v552 = vsel %vm549, %v551, %v547
          %v553 = vmul.f32 1.0, %v552
          %v554 = vtanh.pop %v533
          %v555 = vmul.f32 %v553, %v409
          %557 = vrot.lane.b32.xlu0 %v554, 64
          %v558 = vpop.permute.xlu0 %557
          %v560 = vmul.f32 %v553, %v558
          %562 = vrot.lane.b32.xlu0 %v560, 32
          %v563 = vpop.permute.xlu0 %562
          %v565 = vadd.f32 %v555, %v563
          %v566 = vtanh.pop %v565
          %568 = vrot.lane.b32.xlu0 %v566, 64
          %v569 = vpop.permute.xlu0 %568
          %v571 = vmul.f32 %v553, %v569
          %573 = vrot.lane.b32.xlu0 %v571, 32
          %v574 = vpop.permute.xlu0 %573
          %576 = vrot.lane.b32.xlu0 %v408, 96
          %v577 = vpop.permute.xlu0 %576
          %v579 = vsel %vm414, %v574, %v577
          %s580 = scalar_lea.vmem [#allocation5], 128
          %v581 = vld [vmem:[%s580] sm:$0xff]
          %v582 = vld [vmem:[%s580 + $0x8] sm:$0xff]
          %v583 = vld [vmem:[%s580 + $0x10] sm:$0xff]
          %v584 = vld [vmem:[%s580 + $0x18] sm:$0xff]
          %v585 = vld [vmem:[%s580 + $0x20] sm:$0xff]
          %v586 = vld [vmem:[%s580 + $0x28] sm:$0xff]
          %v587 = vld [vmem:[%s580 + $0x30] sm:$0xff]
          %v588 = vld [vmem:[%s580 + $0x38] sm:$0xff]
          %s589 = scalar_lea.vmem %s4, 2
          %v590 = vld [vmem:[%s589] sm:$0x1]
          %v592 = vperm.slane %v590, 0
          %v595 = vsel %vm428, %v579, 0
          %597 = vmatpush.msra.mxu0 0.0
          %598 = vmatpush.msra.mxu0 0.0
          %599 = vmatpush.msra.mxu0 0.0
          %600 = vmatpush.msra.mxu0 0.0
          %601 = vmatpush.msra.mxu0 0.0
          %602 = vmatpush.msra.mxu0 0.0
          %603 = vmatpush.msra.mxu0 0.0
          %604 = vmatpush.msra.mxu0 0.0
          %605 = vmatpush.msra.mxu0 %v588
          %606 = vmatpush.msra.mxu0 %v587
          %607 = vmatpush.msra.mxu0 %v586
          %608 = vmatpush.msra.mxu0 %v585
          %609 = vmatpush.msra.mxu0 %v584
          %610 = vmatpush.msra.mxu0 %v583
          %611 = vmatpush.msra.mxu0 %v582
          %612 = vmatpush.msra.mxu0 %v581
          %613 = vmatmul.f32.gmra.mxu0 %v595
          %v614 = vpop.f32.mrf.mxu0
          %v615 = vadd.f32 %v592, %v614
          %616 = vdwg.mxu0
          %v617 = vxor.u32 %v615, 2147483648
          %v618 = vmul.f32 %v617, 1.442695
          %v619 = vpow.pop %v618
          %v620 = vadd.f32 %v619, 1.0
          %v621 = vrcp.pop %v620
          %v622 = vmul.f32 %v620, %v621
          %v623 = vsub.f32 1.0, %v622
          %v624 = vmul.f32 %v621, %v623
          %v625 = vadd.f32 %v621, %v624
          %vm626 = vweird.f32 %v620
          %vm627 = vweird.f32 %v621
          %vm628 = vmor %vm626, %vm627
          %v629 = vsel %vm628, %v621, %v625
          %v630 = vand.u32 2147483647, %v620
          %vm631 = vcmp.eq.f32.partialorder %v630, 8.507059e+37
          %v632 = vand.u32 %v620, 2147483648
          %v633 = vor.u32 1.1754944e-38, %v632
          %v634 = vsel %vm631, %v633, %v629
          %v635 = vmul.f32 1.0, %v634
          %v636 = vtanh.pop %v615
          %637 = vrot.lane.b32.xlu0 %v409, 96
          %v638 = vpop.permute.xlu0 %637
          %v640 = vmul.f32 %v635, %v638
          %642 = vrot.lane.b32.xlu0 %v636, 64
          %v643 = vpop.permute.xlu0 %642
          %v645 = vmul.f32 %v635, %v643
          %647 = vrot.lane.b32.xlu0 %v645, 32
          %v648 = vpop.permute.xlu0 %647
          %v650 = vadd.f32 %v640, %v648
          %v651 = vtanh.pop %v650
          %653 = vrot.lane.b32.xlu0 %v651, 64
          %v654 = vpop.permute.xlu0 %653
          %v656 = vmul.f32 %v635, %v654
          %658 = vrot.lane.b32.xlu0 %v656, 32
          %v659 = vpop.permute.xlu0 %658
          %661 = vrot.lane.b32.xlu0 %v408, 64
          %v662 = vpop.permute.xlu0 %661
          %v664 = vsel %vm414, %v659, %v662
          %s665 = scalar_lea.vmem [#allocation5], 192
          %v666 = vld [vmem:[%s665] sm:$0xff]
          %v667 = vld [vmem:[%s665 + $0x8] sm:$0xff]
          %v668 = vld [vmem:[%s665 + $0x10] sm:$0xff]
          %v669 = vld [vmem:[%s665 + $0x18] sm:$0xff]
          %v670 = vld [vmem:[%s665 + $0x20] sm:$0xff]
          %v671 = vld [vmem:[%s665 + $0x28] sm:$0xff]
          %v672 = vld [vmem:[%s665 + $0x30] sm:$0xff]
          %v673 = vld [vmem:[%s665 + $0x38] sm:$0xff]
          %s674 = scalar_lea.vmem %s4, 3
          %v675 = vld [vmem:[%s674] sm:$0x1]
          %v677 = vperm.slane %v675, 0
          %v680 = vsel %vm428, %v664, 0
          %682 = vmatpush.msra.mxu0 0.0
          %683 = vmatpush.msra.mxu0 0.0
          %684 = vmatpush.msra.mxu0 0.0
          %685 = vmatpush.msra.mxu0 0.0
          %686 = vmatpush.msra.mxu0 0.0
          %687 = vmatpush.msra.mxu0 0.0
          %688 = vmatpush.msra.mxu0 0.0
          %689 = vmatpush.msra.mxu0 0.0
          %690 = vmatpush.msra.mxu0 %v673
          %691 = vmatpush.msra.mxu0 %v672
          %692 = vmatpush.msra.mxu0 %v671
          %693 = vmatpush.msra.mxu0 %v670
          %694 = vmatpush.msra.mxu0 %v669
          %695 = vmatpush.msra.mxu0 %v668
          %696 = vmatpush.msra.mxu0 %v667
          %697 = vmatpush.msra.mxu0 %v666
          %698 = vmatmul.f32.gmra.mxu0 %v680
          %v699 = vpop.f32.mrf.mxu0
          %v700 = vadd.f32 %v677, %v699
          %701 = vdwg.mxu0
          %v702 = vxor.u32 %v700, 2147483648
          %v703 = vmul.f32 %v702, 1.442695
          %v704 = vpow.pop %v703
          %v705 = vadd.f32 %v704, 1.0
          %v706 = vrcp.pop %v705
          %v707 = vmul.f32 %v705, %v706
          %v708 = vsub.f32 1.0, %v707
          %v709 = vmul.f32 %v706, %v708
          %v710 = vadd.f32 %v706, %v709
          %vm711 = vweird.f32 %v705
          %vm712 = vweird.f32 %v706
          %vm713 = vmor %vm711, %vm712
          %v714 = vsel %vm713, %v706, %v710
          %v715 = vand.u32 2147483647, %v705
          %vm716 = vcmp.eq.f32.partialorder %v715, 8.507059e+37
          %v717 = vand.u32 %v705, 2147483648
          %v718 = vor.u32 1.1754944e-38, %v717
          %v719 = vsel %vm716, %v718, %v714
          %v720 = vmul.f32 1.0, %v719
          %v721 = vtanh.pop %v700
          %722 = vrot.lane.b32.xlu0 %v409, 64
          %v723 = vpop.permute.xlu0 %722
          %v725 = vmul.f32 %v720, %v723
          %727 = vrot.lane.b32.xlu0 %v721, 64
          %v728 = vpop.permute.xlu0 %727
          %v730 = vmul.f32 %v720, %v728
          %732 = vrot.lane.b32.xlu0 %v730, 32
          %v733 = vpop.permute.xlu0 %732
          %v735 = vadd.f32 %v725, %v733
          %v736 = vtanh.pop %v735
          %738 = vrot.lane.b32.xlu0 %v736, 64
          %v739 = vpop.permute.xlu0 %738
          %v741 = vmul.f32 %v720, %v739
          %742 = vrot.lane.b32.xlu0 %v571, 64
          %v743 = vpop.permute.xlu0 %742
          %745 = vrot.lane.b32.xlu0 %v656, 96
          %v746 = vpop.permute.xlu0 %745
          %v748 = vsel %vm414, %v495, %v743
          %v749 = vsel %vm428, %v748, %v746
          %vm750 = vcmask 785408
          %v751 = vsel %vm750, %v749, %v741
          %752 = vst [vmem:[%s8] sm:$0xff] %v751
          %754 = vrot.lane.b32.xlu0 %v486, 96
          %v755 = vpop.permute.xlu0 %754
          %758 = vrot.lane.b32.xlu0 %v650, 32
          %v759 = vpop.permute.xlu0 %758
          %762 = vrot.lane.b32.xlu0 %v735, 64
          %v763 = vpop.permute.xlu0 %762
          %v765 = vsel %vm414, %v755, %v565
          %v766 = vsel %vm428, %v765, %v759
          %v767 = vsel %vm750, %v766, %v763
          %768 = vst [vmem:[%s9] sm:$0xff] %v767
          %770 = vrot.lane.b32.xlu0 %v741, 32
          %v771 = vpop.permute.xlu0 %770
          %773 = vrot.lane.b32.xlu0 %v741, 64
          %v774 = vpop.permute.xlu0 %773
          %v776 = vsel %vm414, %v771, %v774
          %777 = vst.msk [vmem:[#allocation2] sm:$0xff] %vm428, %v776
          %vm778 = vcmask 7168
          %779 = vst.msk [vmem:[#allocation3] sm:$0xff] %vm778, -inf
          %780 = vst.msk [vmem:[#allocation4] sm:$0xff] %vm778, 0.0
        $region60: #{tpu_custom_call.1} parent=47 // pred_fallthru
          _
        %v781 = vld [vmem:[#allocation2] sm:$0xff]
        %v782 = vpack.c.bf16 %v781, %v781
        %v783 = vld [vmem:[%s358] sm:$0xf]
        %v784 = vld [vmem:[%s358 + $0x4] sm:$0xf]
        %v785 = vld [vmem:[%s358 + $0x8] sm:$0xf]
        %v786 = vld [vmem:[%s358 + $0xc] sm:$0xf]
        %v787 = vld [vmem:[%s358 + $0x10] sm:$0xf]
        %v788 = vld [vmem:[%s358 + $0x14] sm:$0xf]
        %v789 = vld [vmem:[%s358 + $0x18] sm:$0xf]
        %v790 = vld [vmem:[%s358 + $0x1c] sm:$0xf]
        %v791 = vld [vmem:[%s401] sm:$0x1]
        %v793 = vperm.slane %v791, 0
        %v803 = vunpack.c.l.b16 %v783
        %v804 = vunpack.c.l.b16 %v784
        %v805 = vunpack.c.l.b16 %v785
        %v806 = vunpack.c.l.b16 %v786
        %v807 = vunpack.c.l.b16 %v787
        %v808 = vunpack.c.l.b16 %v788
        %v809 = vunpack.c.l.b16 %v789
        %v810 = vunpack.c.l.b16 %v790
        %v811 = vpack.c.b16 %v804, %v803
        %v812 = vpack.c.b16 %v806, %v805
        %v813 = vpack.c.b16 %v808, %v807
        %v814 = vpack.c.b16 %v810, %v809
        %vm819 = vcmask 523264
        %v821 = vsel %vm819, %v782, 0
        %823 = vmatpush.bf16.msra.mxu0 0
        %824 = vmatpush.bf16.msra.mxu0 0
        %825 = vmatpush.bf16.msra.mxu0 0
        %826 = vmatpush.bf16.msra.mxu0 0
        %827 = vmatpush.bf16.msra.mxu0 %v814
        %828 = vmatpush.bf16.msra.mxu0 %v813
        %829 = vmatpush.bf16.msra.mxu0 %v812
        %830 = vmatpush.bf16.msra.mxu0 %v811
        %831 = vmatmul.bf16.gmra.mxu0 %v821
        %v832 = vpop.f32.mrf.mxu0
        %v833 = vadd.f32 %v793, %v832
        %v834 = vpop.f32.mrf.mxu0
        %835 = vdwg.mxu0
        %836 = vst [vmem:[%s392] sm:$0xff] %v833
        %v837 = vld [vmem:[#allocation3] sm:$0xff]
        %838 = vmax.xlane.f32.xlu0 %v833
        %v839 = vpop.xlane.xlu0 %838
        %v840 = vmax.f32 %v837, %v839
        %v841 = vld [vmem:[#allocation4] sm:$0xff]
        %v842 = vsub.f32 %v837, %v840
        %v843 = vmul.f32 %v842, 1.442695
        %v844 = vpow.pop %v843
        %v845 = vmul.f32 %v841, %v844
        %847 = vset.pattern.permute.xlu0 0
        %848 = vperm.xlu0 %847, %v840
        %v849 = vpop.permute.xlu0 %848
        %v851 = vsub.f32 %v833, %v849
        %v852 = vmul.f32 %v851, 1.442695
        %v853 = vpow.pop %v852
        %854 = vadd.xlane.f32.xlu0 %v853
        %v855 = vpop.xlane.xlu0 %854
        %v856 = vadd.f32 %v845, %v855
        %vm857 = vcmask 7168
        %858 = vst.msk [vmem:[#allocation4] sm:$0xff] %vm857, %v856
        %859 = vst.msk [vmem:[#allocation3] sm:$0xff] %vm857, %v840
        %p860 = scmp.eq.s32.totalorder %s29, 1
        // Predicated region
        $region61: #{tpu_custom_call.1} parent=47 // pred_check
          %p861 = pneg %p860
        $region62: #{tpu_custom_call.1} parent=47 // pred_check_branch
          %863 = sbr.rel (%p861) target = $region64
        $region63: #{tpu_custom_call.1} parent=47 // pred_region
          %v864 = vld [vmem:[#allocation3] sm:$0xff]
          %v865 = vld [vmem:[#allocation4] sm:$0xff]
          %v866 = vlog2.pop %v865
          %v867 = vmul.f32 %v866, 0.6931472
          %v868 = vadd.f32 %v864, %v867
          %869 = vst.msk [vmem:[%s10] sm:$0xff] %vm857, %v868
        $region64: #{tpu_custom_call.1} parent=47 // pred_fallthru
          _
        %s870 = sand.u32 %s194, 1
        %s871 = scalar_lea.sflag [#allocation7], %s870
        %s872 = sand.u32 %s194, 1
        %s873 = smul.addr %s872, 8
        %s874 = scalar_lea.vmem [#allocation10], %s873
        // Predicated region
        $region65: #{tpu_custom_call.1} parent=47 // pred_check
          %p875 = pneg %p204
        $region66: #{tpu_custom_call.1} parent=47 // pred_check_branch
          %877 = sbr.rel (%p875) target = $region68
        $region67: #{tpu_custom_call.1} parent=47 // pred_region
          %879 = vsyncadd %s871, 0
          %s880 = smul.addr %s29, 8
          %s881 = scalar_lea.hbm %s7, %s880
          %s883 = sshll.u32 %s874, 4
          %s884 = int_to_ptr.vmem [resolvable:$true] %s883
          %s885 = sshll.u32 %s881, 4
          %s886 = int_to_ptr.hbm [resolvable:$true] %s885
          %888 = dma.vmem_to_hbm [thread:$0]  %s884, 128, %s886, %s871
        $region68: #{tpu_custom_call.1} parent=47 // pred_fallthru
          _
        // Predicated region
        $region69: #{tpu_custom_call.1} parent=47 // pred_check
          %p889 = pneg %p225
        $region70: #{tpu_custom_call.1} parent=47 // pred_check_branch
          %891 = sbr.rel (%p889) target = $region72
        $region71: #{tpu_custom_call.1} parent=47 // pred_region
          _
        $region72: #{tpu_custom_call.1} parent=47 // pred_fallthru
          _
        // Predicated region
        $region73: #{tpu_custom_call.1} parent=47 // pred_check
          %p892 = pneg %p246
        $region74: #{tpu_custom_call.1} parent=47 // pred_check_branch
          %894 = sbr.rel (%p892) target = $region76
        $region75: #{tpu_custom_call.1} parent=47 // pred_region
          _
        $region76: #{tpu_custom_call.1} parent=47 // pred_fallthru
          _
        // Predicated region
        $region77: #{tpu_custom_call.1} parent=47 // pred_check
          %p895 = pneg %p267
        $region78: #{tpu_custom_call.1} parent=47 // pred_check_branch
          %897 = sbr.rel (%p895) target = $region80
        $region79: #{tpu_custom_call.1} parent=47 // pred_region
          _
        $region80: #{tpu_custom_call.1} parent=47 // pred_fallthru
          _
        // Predicated region
        $region81: #{tpu_custom_call.1} parent=47 // pred_check
          %p898 = pneg %p225
        $region82: #{tpu_custom_call.1} parent=47 // pred_check_branch
          %900 = sbr.rel (%p898) target = $region84
        $region83: #{tpu_custom_call.1} parent=47 // pred_region
          _
        $region84: #{tpu_custom_call.1} parent=47 // pred_fallthru
          _
        // Predicated region
        $region85: #{tpu_custom_call.1} parent=47 // pred_check
          %p901 = pneg %p246
        $region86: #{tpu_custom_call.1} parent=47 // pred_check_branch
          %903 = sbr.rel (%p901) target = $region88
        $region87: #{tpu_custom_call.1} parent=47 // pred_region
          _
        $region88: #{tpu_custom_call.1} parent=47 // pred_fallthru
          _
        // Predicated region
        $region89: #{tpu_custom_call.1} parent=47 // pred_check
          %p904 = pneg %p267
        $region90: #{tpu_custom_call.1} parent=47 // pred_check_branch
          %906 = sbr.rel (%p904) target = $region92
        $region91: #{tpu_custom_call.1} parent=47 // pred_region
          _
        $region92: #{tpu_custom_call.1} parent=47 // pred_fallthru
          _
      $region48: #{tpu_custom_call.1} parent=5 // pred_fallthru
        _
      %p907 = scmp.le.s32.totalorder 2, %s24
      // Predicated region
      $region93: #{tpu_custom_call.1} parent=5 // pred_check
        %p908 = pneg %p907
      $region94: #{tpu_custom_call.1} parent=5 // pred_check_branch
        %910 = sbr.rel (%p908) target = $region96
      $region95: #{tpu_custom_call.1} parent=5 // pred_region
        %s911 = ssub.s32 %s24, 2
        // Predicated region
        $region97: #{tpu_custom_call.1} parent=95 // pred_check
          %p912 = pneg %p210
        $region98: #{tpu_custom_call.1} parent=95 // pred_check_branch
          %914 = sbr.rel (%p912) target = $region100
        $region99: #{tpu_custom_call.1} parent=95 // pred_region
          %s915 = sand.u32 %s195, 1
          %s916 = scalar_lea.sflag [#allocation7], %s915
          %s917 = sand.u32 %s195, 1
          %s918 = smul.addr %s917, 8
          %s919 = scalar_lea.vmem [#allocation10], %s918
          %921 = dma.done %s916, 128
        $region100: #{tpu_custom_call.1} parent=95 // pred_fallthru
          _
      $region96: #{tpu_custom_call.1} parent=5 // pred_fallthru
        _
    $region6: #{tpu_custom_call.1} parent=1 // loop_footer
      %s28 = sadd.s32 1, %s24
    $region7: #{tpu_custom_call.1} parent=1 // loop_footer_branch
      %23 = sbr.rel target = $region3
    $region8: #{tpu_custom_call.1} parent=1 // loop_exit
      _
    %922 = vsyncpa [#allocation6], 1
    %s923 = scalar_lea.sflag [#allocation6], 1
    %924 = vsyncpa %s923, 1
    %925 = vsyncpa [#allocation9], 1
    %s926 = scalar_lea.sflag [#allocation9], 1
    %927 = vsyncpa %s926, 1
    %928 = vsyncpa [#allocation7], 1
    %s929 = scalar_lea.sflag [#allocation7], 1
    %930 = vsyncpa %s929, 1

</llo_original>
